<compile_context>
chip_gen: v7x
topology: tpu7x:2x2x1
jax: 0.10.0
libtpu: 0.0.40
codegen_flags: <defaults>
</compile_context>

<pallas_src>
import jax
import jax.numpy as jnp
from jax.experimental import pallas as pl
from jax.experimental.pallas import tpu as pltpu

LANE = 128          # TPU lane width: hidden dim padded to a multiple of this
MAX_TILE_B = 2048   # batch-tile cap (multiple of 8); tiny tiles -> VMEM is never an issue


def _round_up(n, m):
    return ((n + m - 1) // m) * m


def _pick_tile_b(batch):
    """>=8 rows; for large B aim for >=8 grid steps (>=4 per TC on v7x); cap at
    MAX_TILE_B so the per-step overhead is well amortized."""
    t = _round_up(pl.cdiv(max(batch, 1), 8), 8)
    return int(max(8, min(MAX_TILE_B, t)))


def _actor_kernel(x_ref,
                  w1_ref, b1_ref,
                  w2_ref, b2_ref,
                  w3_ref, b3_ref,
                  w4_ref, b4_ref,
                  o_ref):
    # x.float(): cast once on the VMEM tile (no-op if input already f32).
    x = x_ref[...].astype(jnp.float32)

    h = jnp.dot(x, w1_ref[...], preferred_element_type=jnp.float32) + b1_ref[...]
    h = jnp.maximum(h, 0.0)

    h = jnp.dot(h, w2_ref[...], preferred_element_type=jnp.float32) + b2_ref[...]
    h = jnp.maximum(h, 0.0)

    h = jnp.dot(h, w3_ref[...], preferred_element_type=jnp.float32) + b3_ref[...]
    h = jnp.maximum(h, 0.0)

    out = jnp.dot(h, w4_ref[...], preferred_element_type=jnp.float32) + b4_ref[...]
    o_ref[...] = out.astype(o_ref.dtype)


def actor_forward(x, padded_params):
    """x: [B, in_size] (any float dtype). padded_params: hidden-dim-padded
    w1..w4 / b1..b4 (see pad_actor_params). Returns [B, out_size] float32."""
    B, in_size = x.shape
    assert padded_params["w1"].shape[0] == in_size
    h_p = padded_params["w1"].shape[1]
    out_size = padded_params["w4"].shape[1]

    tile_b = _pick_tile_b(B)
    grid = (pl.cdiv(B, tile_b),)

    def resident(i):            # weights/biases stay put across all grid steps
        return (0, 0)

    in_specs = [
        pl.BlockSpec((tile_b, in_size), lambda i: (i, 0)),       # dense x tile
        pl.BlockSpec((in_size, h_p), resident), pl.BlockSpec((1, h_p), resident),
        pl.BlockSpec((h_p, h_p), resident),     pl.BlockSpec((1, h_p), resident),
        pl.BlockSpec((h_p, h_p), resident),     pl.BlockSpec((1, h_p), resident),
        pl.BlockSpec((h_p, out_size), resident), pl.BlockSpec((1, out_size), resident),
    ]

    out = pl.pallas_call(
        _actor_kernel,
        out_shape=jax.ShapeDtypeStruct((B, out_size), jnp.float32),
        grid=grid,
        in_specs=in_specs,
        out_specs=pl.BlockSpec((tile_b, out_size), lambda i: (i, 0)),  # dense out
        compiler_params=pltpu.CompilerParams(
            dimension_semantics=("parallel",)),   # shard batch over both TCs on v7x
    )(x,
      padded_params["w1"], padded_params["b1"],
      padded_params["w2"], padded_params["b2"],
      padded_params["w3"], padded_params["b3"],
      padded_params["w4"], padded_params["b4"])

    return out


def init_actor_params(key, in_size, hidden, out_size):
    """Deterministic init mimicking nn.Linear's U(-1/sqrt(fan_in), 1/sqrt(fan_in)).
    Weights stored as [in, out] (transpose of PyTorch's [out, in]) so the kernel
    computes x @ W + b. These are the *logical* (unpadded) params."""
    dims = [(in_size, hidden), (hidden, hidden), (hidden, hidden), (hidden, out_size)]
    params = {}
    for i, (fan_in, fan_out) in enumerate(dims, start=1):
        key, kw, kb = jax.random.split(key, 3)
        bound = 1.0 / jnp.sqrt(jnp.float32(fan_in))
        params[f"w{i}"] = jax.random.uniform(kw, (fan_in, fan_out), jnp.float32,
                                             minval=-bound, maxval=bound)
        params[f"b{i}"] = jax.random.uniform(kb, (1, fan_out), jnp.float32,
                                             minval=-bound, maxval=bound)
    return params


def pad_actor_params(params, lane=LANE):
    """Zero-pad ONLY the hidden dimension up to a lane multiple (exact for
    Linear+ReLU: padded cols/rows/bias entries are zero, padded units stay 0).
    The input dim of w1 and the output dim of w4 are left unpadded so the x
    read and the output write stay dense in HBM."""
    hidden = params["w1"].shape[1]
    h_p = _round_up(hidden, lane)
    dh = h_p - hidden
    padded = {
        "w1": jnp.pad(params["w1"], ((0, 0), (0, dh))),
        "b1": jnp.pad(params["b1"], ((0, 0), (0, dh))),
        "w2": jnp.pad(params["w2"], ((0, dh), (0, dh))),
        "b2": jnp.pad(params["b2"], ((0, 0), (0, dh))),
        "w3": jnp.pad(params["w3"], ((0, dh), (0, dh))),
        "b3": jnp.pad(params["b3"], ((0, 0), (0, dh))),
        "w4": jnp.pad(params["w4"], ((0, dh), (0, 0))),
        "b4": params["b4"],
    }
    return padded


def actor_reference(x, params):
    """Plain-JAX reference (unpadded params) for correctness check."""
    h = x.astype(jnp.float32)
    h = jnp.maximum(h @ params["w1"] + params["b1"], 0.0)
    h = jnp.maximum(h @ params["w2"] + params["b2"], 0.0)
    h = jnp.maximum(h @ params["w3"] + params["b3"], 0.0)
    return h @ params["w4"] + params["b4"]


if __name__ == "__main__":
    in_size = 16
    hidden_layer_size = 20
    out_size = 8
    batch = 4   # small demo batch; tile size / grid adapt automatically for large B

    key = jax.random.PRNGKey(0)
    key, kx = jax.random.split(key)
    x = jax.random.normal(kx, (batch, in_size), dtype=jnp.float32)

    params = init_actor_params(key, in_size, hidden_layer_size, out_size)
    padded_params = pad_actor_params(params)   # pad once, reuse every call

    out = actor_forward(x, padded_params)
    out = jax.block_until_ready(out)

    ref = actor_reference(x, params)
    assert out.shape == (batch, out_size)
    assert jnp.allclose(out, ref, atol=1e-5, rtol=1e-5), "mismatch vs reference"

    print("KERNEL_OK")
</pallas_src>

<mosaic_0001>
module attributes {stable_mosaic.version = 11 : i64} {
  func.func @_actor_kernel(%arg0: i32, %arg1: memref<8x16xf32, #tpu.memory_space<vmem>>, %arg2: memref<16x128xf32, #tpu.memory_space<vmem>>, %arg3: memref<1x128xf32, #tpu.memory_space<vmem>>, %arg4: memref<128x128xf32, #tpu.memory_space<vmem>>, %arg5: memref<1x128xf32, #tpu.memory_space<vmem>>, %arg6: memref<128x128xf32, #tpu.memory_space<vmem>>, %arg7: memref<1x128xf32, #tpu.memory_space<vmem>>, %arg8: memref<128x8xf32, #tpu.memory_space<vmem>>, %arg9: memref<1x8xf32, #tpu.memory_space<vmem>>, %arg10: memref<8x8xf32, #tpu.memory_space<vmem>>) attributes {dimension_semantics = [#tpu.dimension_semantics<parallel>], iteration_bounds = array<i64: 1>, scalar_prefetch = 0 : i64, scratch_operands = 0 : i64, tpu.core_type = #tpu.core_type<tc>, window_params = [{transform_indices = @transform_0, window_bounds = array<i64: 8, 16>}, {pipeline_mode = #tpu.pipeline_mode<synchronous>, transform_indices = @transform_1, window_bounds = array<i64: 16, 128>}, {pipeline_mode = #tpu.pipeline_mode<synchronous>, transform_indices = @transform_2, window_bounds = array<i64: 1, 128>}, {pipeline_mode = #tpu.pipeline_mode<synchronous>, transform_indices = @transform_3, window_bounds = array<i64: 128, 128>}, {pipeline_mode = #tpu.pipeline_mode<synchronous>, transform_indices = @transform_4, window_bounds = array<i64: 1, 128>}, {pipeline_mode = #tpu.pipeline_mode<synchronous>, transform_indices = @transform_5, window_bounds = array<i64: 128, 128>}, {pipeline_mode = #tpu.pipeline_mode<synchronous>, transform_indices = @transform_6, window_bounds = array<i64: 1, 128>}, {pipeline_mode = #tpu.pipeline_mode<synchronous>, transform_indices = @transform_7, window_bounds = array<i64: 128, 8>}, {pipeline_mode = #tpu.pipeline_mode<synchronous>, transform_indices = @transform_8, window_bounds = array<i64: 1, 8>}, {transform_indices = @transform_9, window_bounds = array<i64: 8, 8>}]} {
    %c0 = arith.constant 0 : index
    %c0_0 = arith.constant 0 : index
    %0 = vector.load %arg1[%c0, %c0_0] : memref<8x16xf32, #tpu.memory_space<vmem>>, vector<8x16xf32>
    %c0_1 = arith.constant 0 : index
    %c0_2 = arith.constant 0 : index
    %1 = vector.load %arg2[%c0_1, %c0_2] : memref<16x128xf32, #tpu.memory_space<vmem>>, vector<16x128xf32>
    %cst = arith.constant dense<0.000000e+00> : vector<8x128xf32>
    %2 = tpu.matmul %0, %1, %cst {dimension_numbers = #tpu.dot_dimension_numbers<[1], [0], [0], [1], [0, 0, 1, 1], [], []>} : vector<8x16xf32>, vector<16x128xf32>, vector<8x128xf32> -> vector<8x128xf32>
    %c0_3 = arith.constant 0 : index
    %c0_4 = arith.constant 0 : index
    %3 = vector.load %arg3[%c0_3, %c0_4] : memref<1x128xf32, #tpu.memory_space<vmem>>, vector<1x128xf32>
    %4 = vector.broadcast %3 : vector<1x128xf32> to vector<8x128xf32>
    %5 = arith.addf %2, %4 : vector<8x128xf32>
    %cst_5 = arith.constant 0.000000e+00 : f32
    %6 = vector.broadcast %cst_5 : f32 to vector<8x128xf32>
    %7 = arith.maximumf %5, %6 : vector<8x128xf32>
    %c0_6 = arith.constant 0 : index
    %c0_7 = arith.constant 0 : index
    %8 = vector.load %arg4[%c0_6, %c0_7] : memref<128x128xf32, #tpu.memory_space<vmem>>, vector<128x128xf32>
    %cst_8 = arith.constant dense<0.000000e+00> : vector<8x128xf32>
    %9 = tpu.matmul %7, %8, %cst_8 {dimension_numbers = #tpu.dot_dimension_numbers<[1], [0], [0], [1], [0, 0, 1, 1], [], []>} : vector<8x128xf32>, vector<128x128xf32>, vector<8x128xf32> -> vector<8x128xf32>
    %c0_9 = arith.constant 0 : index
    %c0_10 = arith.constant 0 : index
    %10 = vector.load %arg5[%c0_9, %c0_10] : memref<1x128xf32, #tpu.memory_space<vmem>>, vector<1x128xf32>
    %11 = vector.broadcast %10 : vector<1x128xf32> to vector<8x128xf32>
    %12 = arith.addf %9, %11 : vector<8x128xf32>
    %cst_11 = arith.constant 0.000000e+00 : f32
    %13 = vector.broadcast %cst_11 : f32 to vector<8x128xf32>
    %14 = arith.maximumf %12, %13 : vector<8x128xf32>
    %c0_12 = arith.constant 0 : index
    %c0_13 = arith.constant 0 : index
    %15 = vector.load %arg6[%c0_12, %c0_13] : memref<128x128xf32, #tpu.memory_space<vmem>>, vector<128x128xf32>
    %cst_14 = arith.constant dense<0.000000e+00> : vector<8x128xf32>
    %16 = tpu.matmul %14, %15, %cst_14 {dimension_numbers = #tpu.dot_dimension_numbers<[1], [0], [0], [1], [0, 0, 1, 1], [], []>} : vector<8x128xf32>, vector<128x128xf32>, vector<8x128xf32> -> vector<8x128xf32>
    %c0_15 = arith.constant 0 : index
    %c0_16 = arith.constant 0 : index
    %17 = vector.load %arg7[%c0_15, %c0_16] : memref<1x128xf32, #tpu.memory_space<vmem>>, vector<1x128xf32>
    %18 = vector.broadcast %17 : vector<1x128xf32> to vector<8x128xf32>
    %19 = arith.addf %16, %18 : vector<8x128xf32>
    %cst_17 = arith.constant 0.000000e+00 : f32
    %20 = vector.broadcast %cst_17 : f32 to vector<8x128xf32>
    %21 = arith.maximumf %19, %20 : vector<8x128xf32>
    %c0_18 = arith.constant 0 : index
    %c0_19 = arith.constant 0 : index
    %22 = vector.load %arg8[%c0_18, %c0_19] : memref<128x8xf32, #tpu.memory_space<vmem>>, vector<128x8xf32>
    %cst_20 = arith.constant dense<0.000000e+00> : vector<8x8xf32>
    %23 = tpu.matmul %21, %22, %cst_20 {dimension_numbers = #tpu.dot_dimension_numbers<[1], [0], [0], [1], [0, 0, 1, 1], [], []>} : vector<8x128xf32>, vector<128x8xf32>, vector<8x8xf32> -> vector<8x8xf32>
    %c0_21 = arith.constant 0 : index
    %c0_22 = arith.constant 0 : index
    %24 = vector.load %arg9[%c0_21, %c0_22] : memref<1x8xf32, #tpu.memory_space<vmem>>, vector<1x8xf32>
    %25 = vector.broadcast %24 : vector<1x8xf32> to vector<8x8xf32>
    %26 = arith.addf %23, %25 : vector<8x8xf32>
    %c0_23 = arith.constant 0 : index
    %c0_24 = arith.constant 0 : index
    %27 = vector.load %arg10[%c0_23, %c0_24] : memref<8x8xf32, #tpu.memory_space<vmem>>, vector<8x8xf32>
    tpu.vector_store %arg10[%c0_23, %c0_24], %26 {strides = array<i32>} : memref<8x8xf32, #tpu.memory_space<vmem>>, vector<8x8xf32>,
    return
  }
  func.func @transform_0(%arg0: i32) -> (i32, i32) {
    %c0_i32 = arith.constant 0 : i32
    %c0_i32_0 = arith.constant 0 : i32
    return %arg0, %c0_i32 : i32, i32
  }
  func.func @transform_1(%arg0: i32) -> (i32, i32) {
    %c0_i32 = arith.constant 0 : i32
    %c0_i32_0 = arith.constant 0 : i32
    %c0_i32_1 = arith.constant 0 : i32
    return %c0_i32, %c0_i32_0 : i32, i32
  }
  func.func @transform_2(%arg0: i32) -> (i32, i32) {
    %c0_i32 = arith.constant 0 : i32
    %c0_i32_0 = arith.constant 0 : i32
    %c0_i32_1 = arith.constant 0 : i32
    return %c0_i32, %c0_i32_0 : i32, i32
  }
  func.func @transform_3(%arg0: i32) -> (i32, i32) {
    %c0_i32 = arith.constant 0 : i32
    %c0_i32_0 = arith.constant 0 : i32
    %c0_i32_1 = arith.constant 0 : i32
    return %c0_i32, %c0_i32_0 : i32, i32
  }
  func.func @transform_4(%arg0: i32) -> (i32, i32) {
    %c0_i32 = arith.constant 0 : i32
    %c0_i32_0 = arith.constant 0 : i32
    %c0_i32_1 = arith.constant 0 : i32
    return %c0_i32, %c0_i32_0 : i32, i32
  }
  func.func @transform_5(%arg0: i32) -> (i32, i32) {
    %c0_i32 = arith.constant 0 : i32
    %c0_i32_0 = arith.constant 0 : i32
    %c0_i32_1 = arith.constant 0 : i32
    return %c0_i32, %c0_i32_0 : i32, i32
  }
  func.func @transform_6(%arg0: i32) -> (i32, i32) {
    %c0_i32 = arith.constant 0 : i32
    %c0_i32_0 = arith.constant 0 : i32
    %c0_i32_1 = arith.constant 0 : i32
    return %c0_i32, %c0_i32_0 : i32, i32
  }
  func.func @transform_7(%arg0: i32) -> (i32, i32) {
    %c0_i32 = arith.constant 0 : i32
    %c0_i32_0 = arith.constant 0 : i32
    %c0_i32_1 = arith.constant 0 : i32
    return %c0_i32, %c0_i32_0 : i32, i32
  }
  func.func @transform_8(%arg0: i32) -> (i32, i32) {
    %c0_i32 = arith.constant 0 : i32
    %c0_i32_0 = arith.constant 0 : i32
    %c0_i32_1 = arith.constant 0 : i32
    return %c0_i32, %c0_i32_0 : i32, i32
  }
  func.func @transform_9(%arg0: i32) -> (i32, i32) {
    %c0_i32 = arith.constant 0 : i32
    %c0_i32_0 = arith.constant 0 : i32
    return %arg0, %c0_i32 : i32, i32
  }
}

</mosaic_0001>

<llo_original>
// kernel: tpu_custom_call.1
$region0: #{tpu_custom_call.1}
  #allocation0 [shape = 'u32[]', space=smem, size = 0x4, offset = 0x4, fixed_abs, tag = 'smem constant byte address 0x4 - core index']
  #allocation1 [shape = 'u32[144,128]{1,0:T(1,128)}', space=vmem, size = 0x12000, scoped, tag = 'internal scratch']
  %s0 = inlined_call_operand.hbm [shape: f32[4,16], index: 0, kind: input, shape index: {}]
  %s1 = inlined_call_operand.vmem [shape: f32[16,128], index: 1, kind: input, shape index: {}]
  %s2 = inlined_call_operand.vmem [shape: f32[1,128], index: 2, kind: input, shape index: {}]
  %s3 = inlined_call_operand.vmem [shape: f32[128,128], index: 3, kind: input, shape index: {}]
  %s4 = inlined_call_operand.vmem [shape: f32[1,128], index: 4, kind: input, shape index: {}]
  %s5 = inlined_call_operand.hbm [shape: f32[128,128], index: 5, kind: input, shape index: {}]
  %s6 = inlined_call_operand.vmem [shape: f32[1,128], index: 6, kind: input, shape index: {}]
  %s7 = inlined_call_operand.vmem [shape: f32[128,8], index: 7, kind: input, shape index: {}]
  %s8 = inlined_call_operand.vmem [shape: f32[1,8], index: 8, kind: input, shape index: {}]
  %s9 = inlined_call_operand.hbm [shape: f32[4,8], index: 9, kind: output, shape index: {}]
  %s10 = sld [smem:[#allocation0]]
  $region54: #{tpu_custom_call.1} parent=0
    _
  %s12 = ssub.s32 1, %s10
  %s13 = scalar_select 0, %s12, %s10
  $region1: #{tpu_custom_call.1} parent=0
    #allocation2 [shape = 'u8[4096]{0}', space=vmem, size = 0x1000, scoped, tag = 'input window, operand 0, single buffered']
    #allocation3 [shape = 's32[1]{0}', space=sflag, size = 0x4, scoped, tag = 'scoped memory for tpu_custom_call.1']
    #allocation4 [shape = 's32[1]{0}', space=sflag, size = 0x4, scoped, tag = 'scoped memory for tpu_custom_call.1']
    #allocation5 [shape = 'u8[65536]{0}', space=vmem, size = 0x10000, scoped, tag = 'input window, operand 5, single buffered']
    #allocation6 [shape = 's32[1]{0}', space=sflag, size = 0x4, scoped, tag = 'scoped memory for tpu_custom_call.1']
    #allocation7 [shape = 'u8[4096]{0}', space=vmem, size = 0x1000, scoped, tag = 'output window, operand 0, single buffered']
    %14 = vsyncpa [#allocation3], 0
    %15 = vsyncpa [#allocation6], 0
    %16 = vsyncpa [#allocation4], 0
    // Predicated region
    $region2: #{tpu_custom_call.1} parent=1 // pred_check
      _
    $region3: #{tpu_custom_call.1} parent=1 // pred_check_branch
      %18 = sbr.rel (0) target = $region5
    $region4: #{tpu_custom_call.1} parent=1 // pred_region
      %s20 = ssub.s32 128, 64
      %21 = vsyncadd [#allocation3], %s20
      %s22 = sshll.u32 [#allocation2], 4
      %s23 = int_to_ptr.vmem [resolvable:$true] %s22
      %28 = dma.hbm_to_vmem [thread:$0]  %s0, 64, %s23, [#allocation3], 64, 64, 4
    $region5: #{tpu_custom_call.1} parent=1 // pred_fallthru
      _
    // Predicated region
    $region6: #{tpu_custom_call.1} parent=1 // pred_check
      _
    $region7: #{tpu_custom_call.1} parent=1 // pred_check_branch
      %30 = sbr.rel (0) target = $region9
    $region8: #{tpu_custom_call.1} parent=1 // pred_region
      _
    $region9: #{tpu_custom_call.1} parent=1 // pred_fallthru
      _
    // Predicated region
    $region10: #{tpu_custom_call.1} parent=1 // pred_check
      _
    $region11: #{tpu_custom_call.1} parent=1 // pred_check_branch
      %32 = sbr.rel (0) target = $region13
    $region12: #{tpu_custom_call.1} parent=1 // pred_region
      _
    $region13: #{tpu_custom_call.1} parent=1 // pred_fallthru
      _
    // Predicated region
    $region14: #{tpu_custom_call.1} parent=1 // pred_check
      _
    $region15: #{tpu_custom_call.1} parent=1 // pred_check_branch
      %34 = sbr.rel (0) target = $region17
    $region16: #{tpu_custom_call.1} parent=1 // pred_region
      _
    $region17: #{tpu_custom_call.1} parent=1 // pred_fallthru
      _
    // Predicated region
    $region18: #{tpu_custom_call.1} parent=1 // pred_check
      _
    $region19: #{tpu_custom_call.1} parent=1 // pred_check_branch
      %36 = sbr.rel (0) target = $region21
    $region20: #{tpu_custom_call.1} parent=1 // pred_region
      _
    $region21: #{tpu_custom_call.1} parent=1 // pred_fallthru
      _
    // Predicated region
    $region22: #{tpu_custom_call.1} parent=1 // pred_check
      _
    $region23: #{tpu_custom_call.1} parent=1 // pred_check_branch
      %38 = sbr.rel (0) target = $region25
    $region24: #{tpu_custom_call.1} parent=1 // pred_region
      %s40 = ssub.s32 2048, 2048
      %41 = vsyncadd [#allocation6], %s40
      %s42 = sshll.u32 [#allocation5], 4
      %s43 = int_to_ptr.vmem [resolvable:$true] %s42
      %48 = dma.hbm_to_vmem [thread:$0]  %s5, 2048, %s43, [#allocation6], 128, 128, 8
    $region25: #{tpu_custom_call.1} parent=1 // pred_fallthru
      _
    // Predicated region
    $region26: #{tpu_custom_call.1} parent=1 // pred_check
      _
    $region27: #{tpu_custom_call.1} parent=1 // pred_check_branch
      %50 = sbr.rel (0) target = $region29
    $region28: #{tpu_custom_call.1} parent=1 // pred_region
      _
    $region29: #{tpu_custom_call.1} parent=1 // pred_fallthru
      _
    // Predicated region
    $region30: #{tpu_custom_call.1} parent=1 // pred_check
      _
    $region31: #{tpu_custom_call.1} parent=1 // pred_check_branch
      %52 = sbr.rel (0) target = $region33
    $region32: #{tpu_custom_call.1} parent=1 // pred_region
      _
    $region33: #{tpu_custom_call.1} parent=1 // pred_fallthru
      _
    // Predicated region
    $region34: #{tpu_custom_call.1} parent=1 // pred_check
      _
    $region35: #{tpu_custom_call.1} parent=1 // pred_check_branch
      %54 = sbr.rel (0) target = $region37
    $region36: #{tpu_custom_call.1} parent=1 // pred_region
      _
    $region37: #{tpu_custom_call.1} parent=1 // pred_fallthru
      _
    // Predicated region
    $region38: #{tpu_custom_call.1} parent=1 // pred_check
      _
    $region39: #{tpu_custom_call.1} parent=1 // pred_check_branch
      %56 = sbr.rel (0) target = $region41
    $region40: #{tpu_custom_call.1} parent=1 // pred_region
      %57 = dma.done [#allocation3], 128
    $region41: #{tpu_custom_call.1} parent=1 // pred_fallthru
      _
    // Predicated region
    $region42: #{tpu_custom_call.1} parent=1 // pred_check
      _
    $region43: #{tpu_custom_call.1} parent=1 // pred_check_branch
      %59 = sbr.rel (0) target = $region45
    $region44: #{tpu_custom_call.1} parent=1 // pred_region
      %60 = dma.done [#allocation6], 2048
    $region45: #{tpu_custom_call.1} parent=1 // pred_fallthru
      _
    %v61 = vld [vmem:[#allocation2] sm:$0xff]
    %v62 = vld [vmem:[%s1] sm:$0xff]
    %v63 = vld [vmem:[%s1 + $0x8] sm:$0xff]
    %v64 = vld [vmem:[%s2] sm:$0x1]
    %v66 = vlaneseq
    %v67 = vshrl.u32 %v66, 7
    %v68 = vsub.s32 0, %v67
    %v69 = vrot.slane %v64, %v68
    %vm71 = vcmask 130048
    %v73 = vsel %vm71, %v61, 0
    %75 = vmatprep.subr.mxu0 0.0
    %76 = vmatpush1.msra.mxu0 %v62
    %77 = vmatprep.subr.mxu0 0.0
    %78 = vmatpush1.msra.mxu0 %v63
    %79 = vmatprep.subr.mxu0 0.0
    %80 = vmatpush1.msra.mxu0 0.0
    %81 = vmatprep.subr.mxu0 0.0
    %82 = vmatpush1.msra.mxu0 0.0
    %83 = vmatprep.subr.mxu0 0.0
    %84 = vmatpush1.msra.mxu0 0.0
    %85 = vmatprep.subr.mxu0 0.0
    %86 = vmatpush1.msra.mxu0 0.0
    %87 = vmatprep.subr.mxu0 0.0
    %88 = vmatpush1.msra.mxu0 0.0
    %89 = vmatprep.subr.mxu0 0.0
    %90 = vmatpush1.msra.mxu0 0.0
    %91 = vmatprep.subr.mxu0 0.0
    %92 = vmatpush1.msra.mxu0 0.0
    %93 = vmatprep.subr.mxu0 0.0
    %94 = vmatpush1.msra.mxu0 0.0
    %95 = vmatprep.subr.mxu0 0.0
    %96 = vmatpush1.msra.mxu0 0.0
    %97 = vmatprep.subr.mxu0 0.0
    %98 = vmatpush1.msra.mxu0 0.0
    %99 = vmatprep.subr.mxu0 0.0
    %100 = vmatpush1.msra.mxu0 0.0
    %101 = vmatprep.subr.mxu0 0.0
    %102 = vmatpush1.msra.mxu0 0.0
    %103 = vmatprep.subr.mxu0 0.0
    %104 = vmatpush1.msra.mxu0 0.0
    %105 = vmatprep.subr.mxu0 0.0
    %106 = vmatpush1.msra.mxu0 0.0
    %107 = vmatprep.subr.mxu0 0.0
    %108 = vmatpush1.msra.mxu0 0.0
    %109 = vmatprep.subr.mxu0 0.0
    %110 = vmatpush1.msra.mxu0 0.0
    %111 = vmatprep.subr.mxu0 0.0
    %112 = vmatpush1.msra.mxu0 0.0
    %113 = vmatprep.subr.mxu0 0.0
    %114 = vmatpush1.msra.mxu0 0.0
    %115 = vmatprep.subr.mxu0 0.0
    %116 = vmatpush1.msra.mxu0 0.0
    %117 = vmatprep.subr.mxu0 0.0
    %118 = vmatpush1.msra.mxu0 0.0
    %119 = vmatprep.subr.mxu0 0.0
    %120 = vmatpush1.msra.mxu0 0.0
    %121 = vmatprep.subr.mxu0 0.0
    %122 = vmatpush1.msra.mxu0 0.0
    %123 = vmatprep.subr.mxu0 0.0
    %124 = vmatpush1.msra.mxu0 0.0
    %125 = vmatprep.subr.mxu0 0.0
    %126 = vmatpush1.msra.mxu0 0.0
    %127 = vmatprep.subr.mxu0 0.0
    %128 = vmatpush1.msra.mxu0 0.0
    %129 = vmatprep.subr.mxu0 0.0
    %130 = vmatpush1.msra.mxu0 0.0
    %131 = vmatprep.subr.mxu0 0.0
    %132 = vmatpush1.msra.mxu0 0.0
    %133 = vmatprep.subr.mxu0 0.0
    %134 = vmatpush1.msra.mxu0 0.0
    %135 = vmatprep.subr.mxu0 0.0
    %136 = vmatpush1.msra.mxu0 0.0
    %137 = vmatprep.subr.mxu0 0.0
    %138 = vmatpush1.msra.mxu0 0.0
    %139 = vmatprep.mubr.f32.mxu0 0.0
    %140 = vmatmul.mubr.f32.gmra.mrb[0].mxu0 %v73
    %v141 = vpop.f32.mrb[0].mxu0
    %v142 = vadd.f32 %v69, %v141
    %v143 = vpop.f32.mrb[0].mxu0
    %144 = vdwg.mxu0
    %v145 = vmax.f32 %v142, 0.0
    %v146 = vld [vmem:[%s3] sm:$0xff]
    %v147 = vld [vmem:[%s3 + $0x8] sm:$0xff]
    %v148 = vld [vmem:[%s3 + $0x10] sm:$0xff]
    %v149 = vld [vmem:[%s3 + $0x18] sm:$0xff]
    %v150 = vld [vmem:[%s3 + $0x20] sm:$0xff]
    %v151 = vld [vmem:[%s3 + $0x28] sm:$0xff]
    %v152 = vld [vmem:[%s3 + $0x30] sm:$0xff]
    %v153 = vld [vmem:[%s3 + $0x38] sm:$0xff]
    %v154 = vld [vmem:[%s3 + $0x40] sm:$0xff]
    %v155 = vld [vmem:[%s3 + $0x48] sm:$0xff]
    %v156 = vld [vmem:[%s3 + $0x50] sm:$0xff]
    %v157 = vld [vmem:[%s3 + $0x58] sm:$0xff]
    %v158 = vld [vmem:[%s3 + $0x60] sm:$0xff]
    %v159 = vld [vmem:[%s3 + $0x68] sm:$0xff]
    %v160 = vld [vmem:[%s3 + $0x70] sm:$0xff]
    %v161 = vld [vmem:[%s3 + $0x78] sm:$0xff]
    %v162 = vld [vmem:[%s4] sm:$0x1]
    %v164 = vlaneseq
    %v165 = vshrl.u32 %v164, 7
    %v166 = vsub.s32 0, %v165
    %v167 = vrot.slane %v162, %v166
    %169 = vmatprep.subr.mxu0 0.0
    %170 = vmatpush1.msra.mxu0 %v146
    %171 = vmatprep.subr.mxu0 0.0
    %172 = vmatpush1.msra.mxu0 %v147
    %173 = vmatprep.subr.mxu0 0.0
    %174 = vmatpush1.msra.mxu0 %v148
    %175 = vmatprep.subr.mxu0 0.0
    %176 = vmatpush1.msra.mxu0 %v149
    %177 = vmatprep.subr.mxu0 0.0
    %178 = vmatpush1.msra.mxu0 %v150
    %179 = vmatprep.subr.mxu0 0.0
    %180 = vmatpush1.msra.mxu0 %v151
    %181 = vmatprep.subr.mxu0 0.0
    %182 = vmatpush1.msra.mxu0 %v152
    %183 = vmatprep.subr.mxu0 0.0
    %184 = vmatpush1.msra.mxu0 %v153
    %185 = vmatprep.subr.mxu0 0.0
    %186 = vmatpush1.msra.mxu0 %v154
    %187 = vmatprep.subr.mxu0 0.0
    %188 = vmatpush1.msra.mxu0 %v155
    %189 = vmatprep.subr.mxu0 0.0
    %190 = vmatpush1.msra.mxu0 %v156
    %191 = vmatprep.subr.mxu0 0.0
    %192 = vmatpush1.msra.mxu0 %v157
    %193 = vmatprep.subr.mxu0 0.0
    %194 = vmatpush1.msra.mxu0 %v158
    %195 = vmatprep.subr.mxu0 0.0
    %196 = vmatpush1.msra.mxu0 %v159
    %197 = vmatprep.subr.mxu0 0.0
    %198 = vmatpush1.msra.mxu0 %v160
    %199 = vmatprep.subr.mxu0 0.0
    %200 = vmatpush1.msra.mxu0 %v161
    %201 = vmatprep.subr.mxu0 0.0
    %202 = vmatpush1.msra.mxu0 0.0
    %203 = vmatprep.subr.mxu0 0.0
    %204 = vmatpush1.msra.mxu0 0.0
    %205 = vmatprep.subr.mxu0 0.0
    %206 = vmatpush1.msra.mxu0 0.0
    %207 = vmatprep.subr.mxu0 0.0
    %208 = vmatpush1.msra.mxu0 0.0
    %209 = vmatprep.subr.mxu0 0.0
    %210 = vmatpush1.msra.mxu0 0.0
    %211 = vmatprep.subr.mxu0 0.0
    %212 = vmatpush1.msra.mxu0 0.0
    %213 = vmatprep.subr.mxu0 0.0
    %214 = vmatpush1.msra.mxu0 0.0
    %215 = vmatprep.subr.mxu0 0.0
    %216 = vmatpush1.msra.mxu0 0.0
    %217 = vmatprep.subr.mxu0 0.0
    %218 = vmatpush1.msra.mxu0 0.0
    %219 = vmatprep.subr.mxu0 0.0
    %220 = vmatpush1.msra.mxu0 0.0
    %221 = vmatprep.subr.mxu0 0.0
    %222 = vmatpush1.msra.mxu0 0.0
    %223 = vmatprep.subr.mxu0 0.0
    %224 = vmatpush1.msra.mxu0 0.0
    %225 = vmatprep.subr.mxu0 0.0
    %226 = vmatpush1.msra.mxu0 0.0
    %227 = vmatprep.subr.mxu0 0.0
    %228 = vmatpush1.msra.mxu0 0.0
    %229 = vmatprep.subr.mxu0 0.0
    %230 = vmatpush1.msra.mxu0 0.0
    %231 = vmatprep.subr.mxu0 0.0
    %232 = vmatpush1.msra.mxu0 0.0
    %233 = vmatprep.mubr.f32.mxu0 0.0
    %234 = vmatmul.mubr.f32.gmra.mrb[0].mxu0 %v145
    %v235 = vpop.f32.mrb[0].mxu0
    %v236 = vadd.f32 %v167, %v235
    %v237 = vpop.f32.mrb[0].mxu0
    %238 = vdwg.mxu0
    %v239 = vmax.f32 %v236, 0.0
    %v240 = vld [vmem:[#allocation5] sm:$0xff]
    %v241 = vld [vmem:[#allocation5 + $0x8] sm:$0xff]
    %v242 = vld [vmem:[#allocation5 + $0x10] sm:$0xff]
    %v243 = vld [vmem:[#allocation5 + $0x18] sm:$0xff]
    %v244 = vld [vmem:[#allocation5 + $0x20] sm:$0xff]
    %v245 = vld [vmem:[#allocation5 + $0x28] sm:$0xff]
    %v246 = vld [vmem:[#allocation5 + $0x30] sm:$0xff]
    %v247 = vld [vmem:[#allocation5 + $0x38] sm:$0xff]
    %v248 = vld [vmem:[#allocation5 + $0x40] sm:$0xff]
    %v249 = vld [vmem:[#allocation5 + $0x48] sm:$0xff]
    %v250 = vld [vmem:[#allocation5 + $0x50] sm:$0xff]
    %v251 = vld [vmem:[#allocation5 + $0x58] sm:$0xff]
    %v252 = vld [vmem:[#allocation5 + $0x60] sm:$0xff]
    %v253 = vld [vmem:[#allocation5 + $0x68] sm:$0xff]
    %v254 = vld [vmem:[#allocation5 + $0x70] sm:$0xff]
    %v255 = vld [vmem:[#allocation5 + $0x78] sm:$0xff]
    %v256 = vld [vmem:[%s6] sm:$0x1]
    %v258 = vlaneseq
    %v259 = vshrl.u32 %v258, 7
    %v260 = vsub.s32 0, %v259
    %v261 = vrot.slane %v256, %v260
    %263 = vmatprep.subr.mxu0 0.0
    %264 = vmatpush1.msra.mxu0 %v240
    %265 = vmatprep.subr.mxu0 0.0
    %266 = vmatpush1.msra.mxu0 %v241
    %267 = vmatprep.subr.mxu0 0.0
    %268 = vmatpush1.msra.mxu0 %v242
    %269 = vmatprep.subr.mxu0 0.0
    %270 = vmatpush1.msra.mxu0 %v243
    %271 = vmatprep.subr.mxu0 0.0
    %272 = vmatpush1.msra.mxu0 %v244
    %273 = vmatprep.subr.mxu0 0.0
    %274 = vmatpush1.msra.mxu0 %v245
    %275 = vmatprep.subr.mxu0 0.0
    %276 = vmatpush1.msra.mxu0 %v246
    %277 = vmatprep.subr.mxu0 0.0
    %278 = vmatpush1.msra.mxu0 %v247
    %279 = vmatprep.subr.mxu0 0.0
    %280 = vmatpush1.msra.mxu0 %v248
    %281 = vmatprep.subr.mxu0 0.0
    %282 = vmatpush1.msra.mxu0 %v249
    %283 = vmatprep.subr.mxu0 0.0
    %284 = vmatpush1.msra.mxu0 %v250
    %285 = vmatprep.subr.mxu0 0.0
    %286 = vmatpush1.msra.mxu0 %v251
    %287 = vmatprep.subr.mxu0 0.0
    %288 = vmatpush1.msra.mxu0 %v252
    %289 = vmatprep.subr.mxu0 0.0
    %290 = vmatpush1.msra.mxu0 %v253
    %291 = vmatprep.subr.mxu0 0.0
    %292 = vmatpush1.msra.mxu0 %v254
    %293 = vmatprep.subr.mxu0 0.0
    %294 = vmatpush1.msra.mxu0 %v255
    %295 = vmatprep.subr.mxu0 0.0
    %296 = vmatpush1.msra.mxu0 0.0
    %297 = vmatprep.subr.mxu0 0.0
    %298 = vmatpush1.msra.mxu0 0.0
    %299 = vmatprep.subr.mxu0 0.0
    %300 = vmatpush1.msra.mxu0 0.0
    %301 = vmatprep.subr.mxu0 0.0
    %302 = vmatpush1.msra.mxu0 0.0
    %303 = vmatprep.subr.mxu0 0.0
    %304 = vmatpush1.msra.mxu0 0.0
    %305 = vmatprep.subr.mxu0 0.0
    %306 = vmatpush1.msra.mxu0 0.0
    %307 = vmatprep.subr.mxu0 0.0
    %308 = vmatpush1.msra.mxu0 0.0
    %309 = vmatprep.subr.mxu0 0.0
    %310 = vmatpush1.msra.mxu0 0.0
    %311 = vmatprep.subr.mxu0 0.0
    %312 = vmatpush1.msra.mxu0 0.0
    %313 = vmatprep.subr.mxu0 0.0
    %314 = vmatpush1.msra.mxu0 0.0
    %315 = vmatprep.subr.mxu0 0.0
    %316 = vmatpush1.msra.mxu0 0.0
    %317 = vmatprep.subr.mxu0 0.0
    %318 = vmatpush1.msra.mxu0 0.0
    %319 = vmatprep.subr.mxu0 0.0
    %320 = vmatpush1.msra.mxu0 0.0
    %321 = vmatprep.subr.mxu0 0.0
    %322 = vmatpush1.msra.mxu0 0.0
    %323 = vmatprep.subr.mxu0 0.0
    %324 = vmatpush1.msra.mxu0 0.0
    %325 = vmatprep.subr.mxu0 0.0
    %326 = vmatpush1.msra.mxu0 0.0
    %327 = vmatprep.mubr.f32.mxu0 0.0
    %328 = vmatmul.mubr.f32.gmra.mrb[0].mxu0 %v239
    %v329 = vpop.f32.mrb[0].mxu0
    %v330 = vadd.f32 %v261, %v329
    %v331 = vpop.f32.mrb[0].mxu0
    %332 = vdwg.mxu0
    %v333 = vmax.f32 %v330, 0.0
    %v334 = vld [vmem:[%s7] sm:$0xff]
    %v335 = vld [vmem:[%s7 + $0x8] sm:$0xff]
    %v336 = vld [vmem:[%s7 + $0x10] sm:$0xff]
    %v337 = vld [vmem:[%s7 + $0x18] sm:$0xff]
    %v338 = vld [vmem:[%s7 + $0x20] sm:$0xff]
    %v339 = vld [vmem:[%s7 + $0x28] sm:$0xff]
    %v340 = vld [vmem:[%s7 + $0x30] sm:$0xff]
    %v341 = vld [vmem:[%s7 + $0x38] sm:$0xff]
    %v342 = vld [vmem:[%s7 + $0x40] sm:$0xff]
    %v343 = vld [vmem:[%s7 + $0x48] sm:$0xff]
    %v344 = vld [vmem:[%s7 + $0x50] sm:$0xff]
    %v345 = vld [vmem:[%s7 + $0x58] sm:$0xff]
    %v346 = vld [vmem:[%s7 + $0x60] sm:$0xff]
    %v347 = vld [vmem:[%s7 + $0x68] sm:$0xff]
    %v348 = vld [vmem:[%s7 + $0x70] sm:$0xff]
    %v349 = vld [vmem:[%s7 + $0x78] sm:$0xff]
    %v350 = vld [vmem:[%s8] sm:$0x1]
    %v352 = vlaneseq
    %v353 = vshrl.u32 %v352, 7
    %v354 = vsub.s32 0, %v353
    %v355 = vrot.slane %v350, %v354
    %357 = vmatprep.subr.mxu0 0.0
    %358 = vmatpush1.msra.mxu0 %v334
    %359 = vmatprep.subr.mxu0 0.0
    %360 = vmatpush1.msra.mxu0 %v335
    %361 = vmatprep.subr.mxu0 0.0
    %362 = vmatpush1.msra.mxu0 %v336
    %363 = vmatprep.subr.mxu0 0.0
    %364 = vmatpush1.msra.mxu0 %v337
    %365 = vmatprep.subr.mxu0 0.0
    %366 = vmatpush1.msra.mxu0 %v338
    %367 = vmatprep.subr.mxu0 0.0
    %368 = vmatpush1.msra.mxu0 %v339
    %369 = vmatprep.subr.mxu0 0.0
    %370 = vmatpush1.msra.mxu0 %v340
    %371 = vmatprep.subr.mxu0 0.0
    %372 = vmatpush1.msra.mxu0 %v341
    %373 = vmatprep.subr.mxu0 0.0
    %374 = vmatpush1.msra.mxu0 %v342
    %375 = vmatprep.subr.mxu0 0.0
    %376 = vmatpush1.msra.mxu0 %v343
    %377 = vmatprep.subr.mxu0 0.0
    %378 = vmatpush1.msra.mxu0 %v344
    %379 = vmatprep.subr.mxu0 0.0
    %380 = vmatpush1.msra.mxu0 %v345
    %381 = vmatprep.subr.mxu0 0.0
    %382 = vmatpush1.msra.mxu0 %v346
    %383 = vmatprep.subr.mxu0 0.0
    %384 = vmatpush1.msra.mxu0 %v347
    %385 = vmatprep.subr.mxu0 0.0
    %386 = vmatpush1.msra.mxu0 %v348
    %387 = vmatprep.subr.mxu0 0.0
    %388 = vmatpush1.msra.mxu0 %v349
    %389 = vmatprep.subr.mxu0 0.0
    %390 = vmatpush1.msra.mxu0 0.0
    %391 = vmatprep.subr.mxu0 0.0
    %392 = vmatpush1.msra.mxu0 0.0
    %393 = vmatprep.subr.mxu0 0.0
    %394 = vmatpush1.msra.mxu0 0.0
    %395 = vmatprep.subr.mxu0 0.0
    %396 = vmatpush1.msra.mxu0 0.0
    %397 = vmatprep.subr.mxu0 0.0
    %398 = vmatpush1.msra.mxu0 0.0
    %399 = vmatprep.subr.mxu0 0.0
    %400 = vmatpush1.msra.mxu0 0.0
    %401 = vmatprep.subr.mxu0 0.0
    %402 = vmatpush1.msra.mxu0 0.0
    %403 = vmatprep.subr.mxu0 0.0
    %404 = vmatpush1.msra.mxu0 0.0
    %405 = vmatprep.subr.mxu0 0.0
    %406 = vmatpush1.msra.mxu0 0.0
    %407 = vmatprep.subr.mxu0 0.0
    %408 = vmatpush1.msra.mxu0 0.0
    %409 = vmatprep.subr.mxu0 0.0
    %410 = vmatpush1.msra.mxu0 0.0
    %411 = vmatprep.subr.mxu0 0.0
    %412 = vmatpush1.msra.mxu0 0.0
    %413 = vmatprep.subr.mxu0 0.0
    %414 = vmatpush1.msra.mxu0 0.0
    %415 = vmatprep.subr.mxu0 0.0
    %416 = vmatpush1.msra.mxu0 0.0
    %417 = vmatprep.subr.mxu0 0.0
    %418 = vmatpush1.msra.mxu0 0.0
    %419 = vmatprep.subr.mxu0 0.0
    %420 = vmatpush1.msra.mxu0 0.0
    %421 = vmatprep.mubr.f32.mxu0 0.0
    %422 = vmatmul.mubr.f32.gmra.mrb[0].mxu0 %v333
    %v423 = vpop.f32.mrb[0].mxu0
    %v424 = vadd.f32 %v355, %v423
    %v425 = vpop.f32.mrb[0].mxu0
    %426 = vdwg.mxu0
    %vm427 = vcmask 64512
    %428 = vst.msk [vmem:[#allocation7] sm:$0xff] %vm427, %v424
    // Predicated region
    $region46: #{tpu_custom_call.1} parent=1 // pred_check
      _
    $region47: #{tpu_custom_call.1} parent=1 // pred_check_branch
      %430 = sbr.rel (0) target = $region49
    $region48: #{tpu_custom_call.1} parent=1 // pred_region
      %s432 = ssub.s32 128, 64
      %433 = vsyncadd [#allocation4], %s432
      %s434 = sshll.u32 [#allocation7], 4
      %s435 = int_to_ptr.vmem [resolvable:$true] %s434
      %440 = dma.vmem_to_hbm [thread:$0]  %s435, 64, %s9, [#allocation4], 64, 64, 4
    $region49: #{tpu_custom_call.1} parent=1 // pred_fallthru
      _
    // Predicated region
    $region50: #{tpu_custom_call.1} parent=1 // pred_check
      _
    $region51: #{tpu_custom_call.1} parent=1 // pred_check_branch
      %442 = sbr.rel (0) target = $region53
    $region52: #{tpu_custom_call.1} parent=1 // pred_region
      %443 = dma.done [#allocation4], 128
    $region53: #{tpu_custom_call.1} parent=1 // pred_fallthru
      _
    %444 = vsyncpa [#allocation3], 1
    %445 = vsyncpa [#allocation6], 1
    %446 = vsyncpa [#allocation4], 1

</llo_original>
